<compile_context>
chip_gen: v5e
topology: v5e:2x2
jax: 0.10.0
libtpu: 0.0.40
codegen_flags: <defaults>
</compile_context>

<pallas_src>
import functools
import math

import jax
import jax.numpy as jnp
from jax.experimental import pallas as pl
from jax.experimental.pallas import tpu as pltpu

TEMPERATURE_SIZE = 365  # vocab size of t_embed in the PyTorch module


def _round_up(x, m):
    return (x + m - 1) // m * m


def _embed_lookup_kernel(idx_ref, tbl_ref, out_ref, *, d_pad, hi_lo):
    """One grid step: look up TILE_N indices in the resident table.

    idx_ref : [TILE_N, 1]  int32   (ids along sublanes)
    tbl_ref : [V_pad, W]   bf16    W = 2*D_pad (hi||lo fused) or D_pad
    out_ref : [TILE_N, d_model]    f32 / bf16
    """
    tn = idx_ref.shape[0]
    v_pad = tbl_ref.shape[0]
    ids = idx_ref[...]                                              # [TN, 1]
    iota_v = jax.lax.broadcasted_iota(jnp.int32, (tn, v_pad), 1)    # [TN, V]
    one_hot = (iota_v == ids).astype(jnp.bfloat16)                  # exact 0/1
    # Single MXU matmul, f32 accumulate:  out[n, :] = sum_v onehot[n, v] * tbl[v, :]
    acc = jnp.dot(one_hot, tbl_ref[...], preferred_element_type=jnp.float32)
    if hi_lo:
        # Recombine hi and lo halves: lane-aligned (d_pad % 128 == 0) VPU add.
        acc = acc[:, :d_pad] + acc[:, d_pad:]
    d_out = out_ref.shape[1]
    if d_out != acc.shape[1]:
        acc = acc[:, :d_out]        # masked lane-tail store (d_model % 128 != 0)
    out_ref[...] = acc.astype(out_ref.dtype)


def _vmem_budgets():
    """(per-step tiling budget, total vmem_limit cap) sized to the chip."""
    cap = None
    try:
        cap = int(pltpu.get_tpu_info().vmem_capacity_bytes)
    except Exception:
        cap = None
    if cap is not None and cap >= 100 * 1024 * 1024:   # v5e / v6e: 128 MiB VMEM
        return 32 * 1024 * 1024, 96 * 1024 * 1024
    # v7x (64 MiB per TensorCore, table duplicated across both cores) or unknown.
    return 20 * 1024 * 1024, 48 * 1024 * 1024


def _per_step_vmem_bytes(t, v_pad, d_pad, table_w, out_itemsize):
    """Honest per-grid-step VMEM footprint at tile size t."""
    out_buf = 2 * t * d_pad * out_itemsize    # double-buffered output block (lane-padded)
    idx_buf = 2 * t * 128 * 4                 # [t,1] i32 lane-pads to (8,128) tiles
    one_hot = t * v_pad * 2                   # bf16 one-hot
    iota_tmp = t * v_pad * 5                  # i32 iota + compare-mask temporaries
    acc = t * table_w * 4                     # f32 matmul result
    recomb = t * d_pad * 4                    # recombined hi+lo (upper bound)
    return out_buf + idx_buf + one_hot + iota_tmp + acc + recomb


def _choose_tile_n(v_pad, d_pad, table_w, out_itemsize, budget_bytes):
    t = 2048
    while t > 8 and _per_step_vmem_bytes(t, v_pad, d_pad, table_w, out_itemsize) > budget_bytes:
        t //= 2
    return t


def make_t_embed_weight(d_model, embed_type=None, seed=0):
    """Deterministic init of the [365, d_model] embedding table.

    embed_type == 'fixed' -> sinusoidal (FixedEmbedding intent), non-learned.
    otherwise             -> nn.Embedding default init ~ N(0, 1).
    """
    v = TEMPERATURE_SIZE
    if embed_type == "fixed":
        position = jnp.arange(v, dtype=jnp.float32)[:, None]               # [V, 1]
        div_term = jnp.exp(
            jnp.arange(0, d_model, 2, dtype=jnp.float32)
            * -(math.log(10000.0) / d_model)
        )                                                                    # [D/2]
        w = jnp.zeros((v, d_model), dtype=jnp.float32)
        w = w.at[:, 0::2].set(jnp.sin(position * div_term))
        w = w.at[:, 1::2].set(jnp.cos(position * div_term))
        return w
    key = jax.random.PRNGKey(seed)
    return jax.random.normal(key, (v, d_model), dtype=jnp.float32)


@functools.partial(jax.jit, static_argnames=("precision", "out_dtype", "tile_n"))
def d_embedding(x_mark, weight, *, precision="float32", out_dtype=jnp.float32,
                tile_n=None):
    """x_mark: [B, S, C_mark] integer marks; weight: [365, d_model] f32 table.

    Returns [B, S, 1, d_model]  ==  t_embed(x_mark.long()[:, :, 0:1]).

    precision: "float32"  -> fused bf16 hi||lo table, one matmul, ~2^-16 rel err.
               "bfloat16" -> single bf16 table (half the MXU work; v5e default
                             recommendation), ~2^-8 rel err.
    out_dtype: jnp.float32 (PyTorch parity) or jnp.bfloat16 (halves HBM writes).
    """
    b, s, _ = x_mark.shape
    v, d = weight.shape
    n = b * s
    out_dtype = jnp.dtype(out_dtype)

    # glue: .long(); select feature 0; flatten.
    idx_flat = x_mark[:, :, 0].astype(jnp.int32).reshape(-1)              # [N]

    # Tiny problems: 128-lane padding would dominate -> plain gather wins.
    if d <= 64 or n < 8:
        out = jnp.take(weight, idx_flat, axis=0).astype(out_dtype)
        return out.reshape(b, s, 1, d)

    v_pad = _round_up(v, 128)      # lane-aligned vocab (365 -> 384)
    d_pad = _round_up(d, 128)      # lane-aligned table columns

    # Table prep (cheap; in a real model hoist this out and reuse per call):
    # pad to [V_pad, D_pad]; single bf16 or fused bf16 hi||lo along D.
    w32 = jnp.zeros((v_pad, d_pad), jnp.float32).at[:v, :d].set(
        weight.astype(jnp.float32))
    hi_lo = precision == "float32"
    if hi_lo:
        w_hi = w32.astype(jnp.bfloat16)
        w_lo = (w32 - w_hi.astype(jnp.float32)).astype(jnp.bfloat16)
        table = jnp.concatenate([w_hi, w_lo], axis=1)                 # [V_pad, 2*D_pad]
    else:
        table = w32.astype(jnp.bfloat16)                              # [V_pad, D_pad]
    table_w = table.shape[1]

    # Tile selection with a chip-sized VMEM budget and honest accounting.
    step_budget, vmem_cap = _vmem_budgets()
    if tile_n is None:
        tile_n = _choose_tile_n(v_pad, d_pad, table_w, out_dtype.itemsize,
                                step_budget)
    n8 = _round_up(n, 8)           # smallest row count allowing 8-aligned blocks
    tile_n = _round_up(max(8, min(tile_n, n8)), 8)
    num_tiles = -(-n8 // tile_n)   # cdiv

    # Index stream: pad to a whole number of tiles with sentinel 0 (< V); the
    # corresponding output rows are clipped on the trailing-block write (or
    # sliced off below in the rare n % 8 != 0 case).
    n_idx = num_tiles * tile_n
    idx = jnp.pad(idx_flat, (0, n_idx - n)).reshape(n_idx, 1)             # [N_idx, 1]

    resident_bytes = 2 * v_pad * table_w * 2   # double-buffered resident table
    per_step = _per_step_vmem_bytes(tile_n, v_pad, d_pad, table_w,
                                    out_dtype.itemsize)
    vmem_limit = int(min(vmem_cap,
                         max(24 * 1024 * 1024, 1.5 * (resident_bytes + per_step))))

    cost = pl.CostEstimate(
        flops=2 * n_idx * v_pad * table_w,                 # one bf16 matmul / tile
        transcendentals=0,
        bytes_accessed=n_idx * 4 + v_pad * table_w * 2 + n * d * out_dtype.itemsize,
    )

    kernel = functools.partial(_embed_lookup_kernel, d_pad=d_pad, hi_lo=hi_lo)

    out_flat = pl.pallas_call(
        kernel,
        out_shape=jax.ShapeDtypeStruct((n8, d), out_dtype),
        grid=(num_tiles,),
        in_specs=[
            pl.BlockSpec((tile_n, 1), lambda i: (i, 0)),        # indices (streamed)
            pl.BlockSpec((v_pad, table_w), lambda i: (0, 0)),   # table (resident)
        ],
        out_specs=pl.BlockSpec((tile_n, d), lambda i: (i, 0)),  # natural-width output
        compiler_params=pltpu.CompilerParams(
            dimension_semantics=("parallel",),
            vmem_limit_bytes=vmem_limit,
        ),
        cost_estimate=cost,
    )(idx, table)

    if n8 != n:   # rare: N not a multiple of 8 -> one small epilogue slice
        out_flat = out_flat[:n]
    # Reshape of the full contiguous result is free (no copy).
    return out_flat.reshape(b, s, 1, d)


if __name__ == "__main__":
    B, S, C_MARK, D_MODEL = 2, 8, 4, 128

    key = jax.random.PRNGKey(0)
    k_idx, _ = jax.random.split(key)
    # integer mark tensor (as PyTorch passes), values in [0, 365)
    x_mark = jax.random.randint(
        k_idx, (B, S, C_MARK), minval=0, maxval=TEMPERATURE_SIZE, dtype=jnp.int32
    )

    weight = make_t_embed_weight(D_MODEL, embed_type=None, seed=0)

    # Pallas kernel path (default f32 precision, f32 output — PyTorch parity).
    out = d_embedding(x_mark, weight)
    out = jax.block_until_ready(out)

    # pure-JAX reference: t_embed(x_mark[:, :, 0:1]) == weight[x_mark[:, :, 0]][:, :, None, :]
    ref = jnp.take(weight, x_mark[:, :, 0], axis=0)[:, :, None, :]
    assert out.shape == (B, S, 1, D_MODEL)
    assert out.dtype == jnp.float32
    # fused bf16 hi/lo table: max relative error vs exact f32 gather ~2^-16.
    assert jnp.allclose(out, ref, rtol=5e-5, atol=1e-6), "mismatch vs reference gather"

    # Optional bf16 fast path (single-matmul table + bf16 output stream).
    out_bf16 = jax.block_until_ready(
        d_embedding(x_mark, weight, precision="bfloat16", out_dtype=jnp.bfloat16))
    assert out_bf16.shape == (B, S, 1, D_MODEL) and out_bf16.dtype == jnp.bfloat16
    assert jnp.allclose(out_bf16.astype(jnp.float32), ref, rtol=2e-2, atol=2e-2)

    # Tiny-d_model dispatch (jnp.take fallback) sanity check.
    w_small = make_t_embed_weight(32, embed_type=None, seed=0)
    out_small = jax.block_until_ready(d_embedding(x_mark, w_small))
    assert out_small.shape == (B, S, 1, 32)

    print("KERNEL_OK")
</pallas_src>

<mosaic_0001>
module attributes {stable_mosaic.version = 11 : i64} {
  func.func @_embed_lookup_kernel(%arg0: i32, %arg1: memref<16x1xi32, #tpu.memory_space<vmem>>, %arg2: memref<384x256xbf16, #tpu.memory_space<vmem>>, %arg3: memref<16x128xf32, #tpu.memory_space<vmem>>) attributes {dimension_semantics = [#tpu.dimension_semantics<parallel>], iteration_bounds = array<i64: 1>, scalar_prefetch = 0 : i64, scratch_operands = 0 : i64, tpu.core_type = #tpu.core_type<tc>, window_params = [{transform_indices = @transform_0, window_bounds = array<i64: 16, 1>}, {pipeline_mode = #tpu.pipeline_mode<synchronous>, transform_indices = @transform_1, window_bounds = array<i64: 384, 256>}, {transform_indices = @transform_2, window_bounds = array<i64: 16, 128>}]} {
    %c0 = arith.constant 0 : index
    %c0_0 = arith.constant 0 : index
    %0 = vector.load %arg1[%c0, %c0_0] : memref<16x1xi32, #tpu.memory_space<vmem>>, vector<16x1xi32>
    %1 = tpu.iota {dimensions = array<i32: 1>} : vector<16x384xi32>
    %2 = vector.broadcast %0 : vector<16x1xi32> to vector<16x384xi32>
    %3 = arith.cmpi eq, %1, %2 : vector<16x384xi32>
    %4 = arith.extui %3 : vector<16x384xi1> to vector<16x384xi32>
    %5 = arith.sitofp %4 : vector<16x384xi32> to vector<16x384xf32>
    %6 = arith.truncf %5 : vector<16x384xf32> to vector<16x384xbf16>
    %c0_1 = arith.constant 0 : index
    %c0_2 = arith.constant 0 : index
    %7 = vector.load %arg2[%c0_1, %c0_2] : memref<384x256xbf16, #tpu.memory_space<vmem>>, vector<384x256xbf16>
    %cst = arith.constant dense<0.000000e+00> : vector<16x256xf32>
    %8 = tpu.matmul %6, %7, %cst {dimension_numbers = #tpu.dot_dimension_numbers<[1], [0], [0], [1], [0, 0, 1, 1], [], []>} : vector<16x384xbf16>, vector<384x256xbf16>, vector<16x256xf32> -> vector<16x256xf32>
    %9 = vector.extract_strided_slice %8 {offsets = [0, 0], sizes = [16, 128], strides = [1, 1]} : vector<16x256xf32> to vector<16x128xf32>
    %10 = vector.extract_strided_slice %8 {offsets = [0, 128], sizes = [16, 128], strides = [1, 1]} : vector<16x256xf32> to vector<16x128xf32>
    %11 = arith.addf %9, %10 : vector<16x128xf32>
    %c0_3 = arith.constant 0 : index
    %c0_4 = arith.constant 0 : index
    %12 = vector.load %arg3[%c0_3, %c0_4] : memref<16x128xf32, #tpu.memory_space<vmem>>, vector<16x128xf32>
    tpu.vector_store %arg3[%c0_3, %c0_4], %11 {strides = array<i32>} : memref<16x128xf32, #tpu.memory_space<vmem>>, vector<16x128xf32>,
    return
  }
  func.func @transform_0(%arg0: i32) -> (i32, i32) {
    %c0_i32 = arith.constant 0 : i32
    %c0_i32_0 = arith.constant 0 : i32
    return %arg0, %c0_i32 : i32, i32
  }
  func.func @transform_1(%arg0: i32) -> (i32, i32) {
    %c0_i32 = arith.constant 0 : i32
    %c0_i32_0 = arith.constant 0 : i32
    %c0_i32_1 = arith.constant 0 : i32
    return %c0_i32, %c0_i32_0 : i32, i32
  }
  func.func @transform_2(%arg0: i32) -> (i32, i32) {
    %c0_i32 = arith.constant 0 : i32
    %c0_i32_0 = arith.constant 0 : i32
    return %arg0, %c0_i32 : i32, i32
  }
}

</mosaic_0001>

<llo_original>
// kernel: d_embedding.1
$region0: #{d_embedding.1}
  #allocation0 [shape = 'u32[]', space=smem, size = 0x4, offset = 0x4, fixed_abs, tag = 'smem constant byte address 0x4 - core index']
  #allocation1 [shape = 'u32[72,128]{1,0:T(1,128)}', space=vmem, size = 0x9000, scoped, tag = 'internal scratch']
  %s0 = inlined_call_operand.vmem [shape: s32[16,1], index: 0, kind: input, shape index: {}]
  %s1 = inlined_call_operand.vmem [shape: bf16[384,256], index: 1, kind: input, shape index: {}]
  %s2 = inlined_call_operand.hbm [shape: f32[16,128], index: 2, kind: output, shape index: {}]
  %s3 = sld [smem:[#allocation0]]
  $region18: #{d_embedding.1} parent=0
    _
  %s5 = ssub.s32 1, %s3
  %s6 = scalar_select 0, %s5, %s3
  $region1: #{d_embedding.1} parent=0
    #allocation2 [shape = 'u8[8192]{0}', space=vmem, size = 0x2000, scoped, tag = 'output window, operand 0, single buffered']
    #allocation3 [shape = 's32[1]{0}', space=sflag, size = 0x4, scoped, tag = 'scoped memory for d_embedding.1']
    %7 = vsyncpa [#allocation3], 0
    // Predicated region
    $region2: #{d_embedding.1} parent=1 // pred_check
      _
    $region3: #{d_embedding.1} parent=1 // pred_check_branch
      %9 = sbr.rel (0) target = $region5
    $region4: #{d_embedding.1} parent=1 // pred_region
      _
    $region5: #{d_embedding.1} parent=1 // pred_fallthru
      _
    // Predicated region
    $region6: #{d_embedding.1} parent=1 // pred_check
      _
    $region7: #{d_embedding.1} parent=1 // pred_check_branch
      %11 = sbr.rel (0) target = $region9
    $region8: #{d_embedding.1} parent=1 // pred_region
      _
    $region9: #{d_embedding.1} parent=1 // pred_fallthru
      _
    %v12 = vld [vmem:[%s0] sm:$0xff]
    %v13 = vld [vmem:[%s0 + $0x8] sm:$0xff]
    %v14 = vlaneseq
    %v15 = vand.u32 %v14, 127
    %v16 = vadd.s32 %v15, 128
    %v17 = vadd.s32 %v15, 256
    %18 = vset.pattern.permute.xlu0 0
    %19 = vperm.xlu0 %18, %v12
    %v20 = vpop.permute.xlu0 %19
    %21 = vset.pattern.permute.xlu0 0
    %22 = vperm.xlu0 %21, %v13
    %v23 = vpop.permute.xlu0 %22
    %vm24 = vcmp.eq.s32.totalorder %v15, %v20
    %vm25 = vcmp.eq.s32.totalorder %v16, %v20
    %vm26 = vcmp.eq.s32.totalorder %v17, %v20
    %vm27 = vcmp.eq.s32.totalorder %v15, %v23
    %vm28 = vcmp.eq.s32.totalorder %v16, %v23
    %vm29 = vcmp.eq.s32.totalorder %v17, %v23
    %v30 = vsel %vm24, 1, 0
    %v31 = vsel %vm25, 1, 0
    %v32 = vsel %vm26, 1, 0
    %v33 = vsel %vm27, 1, 0
    %v34 = vsel %vm28, 1, 0
    %v35 = vsel %vm29, 1, 0
    %v36 = vcvt.s32.f32 %v30
    %v37 = vcvt.s32.f32 %v31
    %v38 = vcvt.s32.f32 %v32
    %v39 = vcvt.s32.f32 %v33
    %v40 = vcvt.s32.f32 %v34
    %v41 = vcvt.s32.f32 %v35
    %v42 = vpack.c.bf16 %v39, %v36
    %v43 = vpack.c.bf16 %v40, %v37
    %v44 = vpack.c.bf16 %v41, %v38
    %v45 = vld [vmem:[%s1] sm:$0xff]
    %v46 = vld [vmem:[%s1 + $0x8] sm:$0xff]
    %v47 = vld [vmem:[%s1 + $0x10] sm:$0xff]
    %v48 = vld [vmem:[%s1 + $0x18] sm:$0xff]
    %v49 = vld [vmem:[%s1 + $0x20] sm:$0xff]
    %v50 = vld [vmem:[%s1 + $0x28] sm:$0xff]
    %v51 = vld [vmem:[%s1 + $0x30] sm:$0xff]
    %v52 = vld [vmem:[%s1 + $0x38] sm:$0xff]
    %v53 = vld [vmem:[%s1 + $0x40] sm:$0xff]
    %v54 = vld [vmem:[%s1 + $0x48] sm:$0xff]
    %v55 = vld [vmem:[%s1 + $0x50] sm:$0xff]
    %v56 = vld [vmem:[%s1 + $0x58] sm:$0xff]
    %v57 = vld [vmem:[%s1 + $0x60] sm:$0xff]
    %v58 = vld [vmem:[%s1 + $0x68] sm:$0xff]
    %v59 = vld [vmem:[%s1 + $0x70] sm:$0xff]
    %v60 = vld [vmem:[%s1 + $0x78] sm:$0xff]
    %v61 = vld [vmem:[%s1 + $0x80] sm:$0xff]
    %v62 = vld [vmem:[%s1 + $0x88] sm:$0xff]
    %v63 = vld [vmem:[%s1 + $0x90] sm:$0xff]
    %v64 = vld [vmem:[%s1 + $0x98] sm:$0xff]
    %v65 = vld [vmem:[%s1 + $0xa0] sm:$0xff]
    %v66 = vld [vmem:[%s1 + $0xa8] sm:$0xff]
    %v67 = vld [vmem:[%s1 + $0xb0] sm:$0xff]
    %v68 = vld [vmem:[%s1 + $0xb8] sm:$0xff]
    %v69 = vld [vmem:[%s1 + $0xc0] sm:$0xff]
    %v70 = vld [vmem:[%s1 + $0xc8] sm:$0xff]
    %v71 = vld [vmem:[%s1 + $0xd0] sm:$0xff]
    %v72 = vld [vmem:[%s1 + $0xd8] sm:$0xff]
    %v73 = vld [vmem:[%s1 + $0xe0] sm:$0xff]
    %v74 = vld [vmem:[%s1 + $0xe8] sm:$0xff]
    %v75 = vld [vmem:[%s1 + $0xf0] sm:$0xff]
    %v76 = vld [vmem:[%s1 + $0xf8] sm:$0xff]
    %v77 = vld [vmem:[%s1 + $0x100] sm:$0xff]
    %v78 = vld [vmem:[%s1 + $0x108] sm:$0xff]
    %v79 = vld [vmem:[%s1 + $0x110] sm:$0xff]
    %v80 = vld [vmem:[%s1 + $0x118] sm:$0xff]
    %v81 = vld [vmem:[%s1 + $0x120] sm:$0xff]
    %v82 = vld [vmem:[%s1 + $0x128] sm:$0xff]
    %v83 = vld [vmem:[%s1 + $0x130] sm:$0xff]
    %v84 = vld [vmem:[%s1 + $0x138] sm:$0xff]
    %v85 = vld [vmem:[%s1 + $0x140] sm:$0xff]
    %v86 = vld [vmem:[%s1 + $0x148] sm:$0xff]
    %v87 = vld [vmem:[%s1 + $0x150] sm:$0xff]
    %v88 = vld [vmem:[%s1 + $0x158] sm:$0xff]
    %v89 = vld [vmem:[%s1 + $0x160] sm:$0xff]
    %v90 = vld [vmem:[%s1 + $0x168] sm:$0xff]
    %v91 = vld [vmem:[%s1 + $0x170] sm:$0xff]
    %v92 = vld [vmem:[%s1 + $0x178] sm:$0xff]
    %v141 = vunpack.c.l.b16 %v45
    %v142 = vunpack.c.h.b16 %v45
    %v143 = vunpack.c.l.b16 %v46
    %v144 = vunpack.c.h.b16 %v46
    %v145 = vunpack.c.l.b16 %v47
    %v146 = vunpack.c.h.b16 %v47
    %v147 = vunpack.c.l.b16 %v48
    %v148 = vunpack.c.h.b16 %v48
    %v149 = vunpack.c.l.b16 %v49
    %v150 = vunpack.c.h.b16 %v49
    %v151 = vunpack.c.l.b16 %v50
    %v152 = vunpack.c.h.b16 %v50
    %v153 = vunpack.c.l.b16 %v51
    %v154 = vunpack.c.h.b16 %v51
    %v155 = vunpack.c.l.b16 %v52
    %v156 = vunpack.c.h.b16 %v52
    %v157 = vunpack.c.l.b16 %v53
    %v158 = vunpack.c.h.b16 %v53
    %v159 = vunpack.c.l.b16 %v54
    %v160 = vunpack.c.h.b16 %v54
    %v161 = vunpack.c.l.b16 %v55
    %v162 = vunpack.c.h.b16 %v55
    %v163 = vunpack.c.l.b16 %v56
    %v164 = vunpack.c.h.b16 %v56
    %v165 = vunpack.c.l.b16 %v57
    %v166 = vunpack.c.h.b16 %v57
    %v167 = vunpack.c.l.b16 %v58
    %v168 = vunpack.c.h.b16 %v58
    %v169 = vunpack.c.l.b16 %v59
    %v170 = vunpack.c.h.b16 %v59
    %v171 = vunpack.c.l.b16 %v60
    %v172 = vunpack.c.h.b16 %v60
    %v173 = vunpack.c.l.b16 %v61
    %v174 = vunpack.c.h.b16 %v61
    %v175 = vunpack.c.l.b16 %v62
    %v176 = vunpack.c.h.b16 %v62
    %v177 = vunpack.c.l.b16 %v63
    %v178 = vunpack.c.h.b16 %v63
    %v179 = vunpack.c.l.b16 %v64
    %v180 = vunpack.c.h.b16 %v64
    %v181 = vunpack.c.l.b16 %v65
    %v182 = vunpack.c.h.b16 %v65
    %v183 = vunpack.c.l.b16 %v66
    %v184 = vunpack.c.h.b16 %v66
    %v185 = vunpack.c.l.b16 %v67
    %v186 = vunpack.c.h.b16 %v67
    %v187 = vunpack.c.l.b16 %v68
    %v188 = vunpack.c.h.b16 %v68
    %v189 = vunpack.c.l.b16 %v69
    %v190 = vunpack.c.h.b16 %v69
    %v191 = vunpack.c.l.b16 %v70
    %v192 = vunpack.c.h.b16 %v70
    %v193 = vunpack.c.l.b16 %v71
    %v194 = vunpack.c.h.b16 %v71
    %v195 = vunpack.c.l.b16 %v72
    %v196 = vunpack.c.h.b16 %v72
    %v197 = vunpack.c.l.b16 %v73
    %v198 = vunpack.c.h.b16 %v73
    %v199 = vunpack.c.l.b16 %v74
    %v200 = vunpack.c.h.b16 %v74
    %v201 = vunpack.c.l.b16 %v75
    %v202 = vunpack.c.h.b16 %v75
    %v203 = vunpack.c.l.b16 %v76
    %v204 = vunpack.c.h.b16 %v76
    %v205 = vunpack.c.l.b16 %v77
    %v206 = vunpack.c.h.b16 %v77
    %v207 = vunpack.c.l.b16 %v78
    %v208 = vunpack.c.h.b16 %v78
    %v209 = vunpack.c.l.b16 %v79
    %v210 = vunpack.c.h.b16 %v79
    %v211 = vunpack.c.l.b16 %v80
    %v212 = vunpack.c.h.b16 %v80
    %v213 = vunpack.c.l.b16 %v81
    %v214 = vunpack.c.h.b16 %v81
    %v215 = vunpack.c.l.b16 %v82
    %v216 = vunpack.c.h.b16 %v82
    %v217 = vunpack.c.l.b16 %v83
    %v218 = vunpack.c.h.b16 %v83
    %v219 = vunpack.c.l.b16 %v84
    %v220 = vunpack.c.h.b16 %v84
    %v221 = vunpack.c.l.b16 %v85
    %v222 = vunpack.c.h.b16 %v85
    %v223 = vunpack.c.l.b16 %v86
    %v224 = vunpack.c.h.b16 %v86
    %v225 = vunpack.c.l.b16 %v87
    %v226 = vunpack.c.h.b16 %v87
    %v227 = vunpack.c.l.b16 %v88
    %v228 = vunpack.c.h.b16 %v88
    %v229 = vunpack.c.l.b16 %v89
    %v230 = vunpack.c.h.b16 %v89
    %v231 = vunpack.c.l.b16 %v90
    %v232 = vunpack.c.h.b16 %v90
    %v233 = vunpack.c.l.b16 %v91
    %v234 = vunpack.c.h.b16 %v91
    %v235 = vunpack.c.l.b16 %v92
    %v236 = vunpack.c.h.b16 %v92
    %v237 = vpack.c.b16 %v143, %v141
    %v238 = vpack.c.b16 %v144, %v142
    %v239 = vpack.c.b16 %v147, %v145
    %v240 = vpack.c.b16 %v148, %v146
    %v241 = vpack.c.b16 %v151, %v149
    %v242 = vpack.c.b16 %v152, %v150
    %v243 = vpack.c.b16 %v155, %v153
    %v244 = vpack.c.b16 %v156, %v154
    %v245 = vpack.c.b16 %v159, %v157
    %v246 = vpack.c.b16 %v160, %v158
    %v247 = vpack.c.b16 %v163, %v161
    %v248 = vpack.c.b16 %v164, %v162
    %v249 = vpack.c.b16 %v167, %v165
    %v250 = vpack.c.b16 %v168, %v166
    %v251 = vpack.c.b16 %v171, %v169
    %v252 = vpack.c.b16 %v172, %v170
    %v253 = vpack.c.b16 %v175, %v173
    %v254 = vpack.c.b16 %v176, %v174
    %v255 = vpack.c.b16 %v179, %v177
    %v256 = vpack.c.b16 %v180, %v178
    %v257 = vpack.c.b16 %v183, %v181
    %v258 = vpack.c.b16 %v184, %v182
    %v259 = vpack.c.b16 %v187, %v185
    %v260 = vpack.c.b16 %v188, %v186
    %v261 = vpack.c.b16 %v191, %v189
    %v262 = vpack.c.b16 %v192, %v190
    %v263 = vpack.c.b16 %v195, %v193
    %v264 = vpack.c.b16 %v196, %v194
    %v265 = vpack.c.b16 %v199, %v197
    %v266 = vpack.c.b16 %v200, %v198
    %v267 = vpack.c.b16 %v203, %v201
    %v268 = vpack.c.b16 %v204, %v202
    %v269 = vpack.c.b16 %v207, %v205
    %v270 = vpack.c.b16 %v208, %v206
    %v271 = vpack.c.b16 %v211, %v209
    %v272 = vpack.c.b16 %v212, %v210
    %v273 = vpack.c.b16 %v215, %v213
    %v274 = vpack.c.b16 %v216, %v214
    %v275 = vpack.c.b16 %v219, %v217
    %v276 = vpack.c.b16 %v220, %v218
    %v277 = vpack.c.b16 %v223, %v221
    %v278 = vpack.c.b16 %v224, %v222
    %v279 = vpack.c.b16 %v227, %v225
    %v280 = vpack.c.b16 %v228, %v226
    %v281 = vpack.c.b16 %v231, %v229
    %v282 = vpack.c.b16 %v232, %v230
    %v283 = vpack.c.b16 %v235, %v233
    %v284 = vpack.c.b16 %v236, %v234
    %333 = vmatpush.bf16.msra.mxu0 %v251
    %334 = vmatpush.bf16.msra.mxu0 %v249
    %335 = vmatpush.bf16.msra.mxu0 %v247
    %336 = vmatpush.bf16.msra.mxu0 %v245
    %337 = vmatpush.bf16.msra.mxu0 %v243
    %338 = vmatpush.bf16.msra.mxu0 %v241
    %339 = vmatpush.bf16.msra.mxu0 %v239
    %340 = vmatpush.bf16.msra.mxu0 %v237
    %341 = vmatmul.bf16.gmra.mxu0 %v42
    %v342 = vpop.f32.mrf.mxu0
    %v343 = vadd.f32 0.0, %v342
    %v344 = vpop.f32.mrf.mxu0
    %v345 = vadd.f32 0.0, %v344
    %346 = vdwg.mxu0
    %347 = vmatpush.bf16.msra.mxu0 %v267
    %348 = vmatpush.bf16.msra.mxu0 %v265
    %349 = vmatpush.bf16.msra.mxu0 %v263
    %350 = vmatpush.bf16.msra.mxu0 %v261
    %351 = vmatpush.bf16.msra.mxu0 %v259
    %352 = vmatpush.bf16.msra.mxu0 %v257
    %353 = vmatpush.bf16.msra.mxu0 %v255
    %354 = vmatpush.bf16.msra.mxu0 %v253
    %355 = vmatmul.bf16.gmra.mxu0 %v43
    %v356 = vpop.f32.mrf.mxu0
    %v357 = vadd.f32 %v343, %v356
    %v358 = vpop.f32.mrf.mxu0
    %v359 = vadd.f32 %v345, %v358
    %360 = vdwg.mxu0
    %361 = vmatpush.bf16.msra.mxu0 %v283
    %362 = vmatpush.bf16.msra.mxu0 %v281
    %363 = vmatpush.bf16.msra.mxu0 %v279
    %364 = vmatpush.bf16.msra.mxu0 %v277
    %365 = vmatpush.bf16.msra.mxu0 %v275
    %366 = vmatpush.bf16.msra.mxu0 %v273
    %367 = vmatpush.bf16.msra.mxu0 %v271
    %368 = vmatpush.bf16.msra.mxu0 %v269
    %369 = vmatmul.bf16.gmra.mxu0 %v44
    %v370 = vpop.f32.mrf.mxu0
    %v371 = vadd.f32 %v357, %v370
    %v372 = vpop.f32.mrf.mxu0
    %v373 = vadd.f32 %v359, %v372
    %374 = vdwg.mxu0
    %375 = vmatpush.bf16.msra.mxu0 %v252
    %376 = vmatpush.bf16.msra.mxu0 %v250
    %377 = vmatpush.bf16.msra.mxu0 %v248
    %378 = vmatpush.bf16.msra.mxu0 %v246
    %379 = vmatpush.bf16.msra.mxu0 %v244
    %380 = vmatpush.bf16.msra.mxu0 %v242
    %381 = vmatpush.bf16.msra.mxu0 %v240
    %382 = vmatpush.bf16.msra.mxu0 %v238
    %383 = vmatmul.bf16.gmra.mxu0 %v42
    %v384 = vpop.f32.mrf.mxu0
    %v385 = vadd.f32 0.0, %v384
    %v386 = vpop.f32.mrf.mxu0
    %v387 = vadd.f32 0.0, %v386
    %388 = vdwg.mxu0
    %389 = vmatpush.bf16.msra.mxu0 %v268
    %390 = vmatpush.bf16.msra.mxu0 %v266
    %391 = vmatpush.bf16.msra.mxu0 %v264
    %392 = vmatpush.bf16.msra.mxu0 %v262
    %393 = vmatpush.bf16.msra.mxu0 %v260
    %394 = vmatpush.bf16.msra.mxu0 %v258
    %395 = vmatpush.bf16.msra.mxu0 %v256
    %396 = vmatpush.bf16.msra.mxu0 %v254
    %397 = vmatmul.bf16.gmra.mxu0 %v43
    %v398 = vpop.f32.mrf.mxu0
    %v399 = vadd.f32 %v385, %v398
    %v400 = vpop.f32.mrf.mxu0
    %v401 = vadd.f32 %v387, %v400
    %402 = vdwg.mxu0
    %403 = vmatpush.bf16.msra.mxu0 %v284
    %404 = vmatpush.bf16.msra.mxu0 %v282
    %405 = vmatpush.bf16.msra.mxu0 %v280
    %406 = vmatpush.bf16.msra.mxu0 %v278
    %407 = vmatpush.bf16.msra.mxu0 %v276
    %408 = vmatpush.bf16.msra.mxu0 %v274
    %409 = vmatpush.bf16.msra.mxu0 %v272
    %410 = vmatpush.bf16.msra.mxu0 %v270
    %411 = vmatmul.bf16.gmra.mxu0 %v44
    %v412 = vpop.f32.mrf.mxu0
    %v413 = vadd.f32 %v399, %v412
    %v414 = vpop.f32.mrf.mxu0
    %v415 = vadd.f32 %v401, %v414
    %416 = vdwg.mxu0
    %v417 = vadd.f32 %v371, %v413
    %v418 = vadd.f32 %v373, %v415
    %419 = vst [vmem:[#allocation2] sm:$0xff] %v417
    %420 = vst [vmem:[#allocation2 + $0x8] sm:$0xff] %v418
    // Predicated region
    $region10: #{d_embedding.1} parent=1 // pred_check
      _
    $region11: #{d_embedding.1} parent=1 // pred_check_branch
      %422 = sbr.rel (0) target = $region13
    $region12: #{d_embedding.1} parent=1 // pred_region
      %424 = vsyncadd [#allocation3], 0
      %s425 = sshll.u32 [#allocation2], 4
      %s426 = int_to_ptr.vmem [resolvable:$true] %s425
      %s427 = sshll.u32 %s2, 4
      %s428 = int_to_ptr.hbm [resolvable:$true] %s427
      %433 = dma.vmem_to_hbm [thread:$0]  %s426, 256, %s428, [#allocation3], 128, 128, 8
    $region13: #{d_embedding.1} parent=1 // pred_fallthru
      _
    // Predicated region
    $region14: #{d_embedding.1} parent=1 // pred_check
      _
    $region15: #{d_embedding.1} parent=1 // pred_check_branch
      %435 = sbr.rel (0) target = $region17
    $region16: #{d_embedding.1} parent=1 // pred_region
      %437 = dma.done [#allocation3], 256
    $region17: #{d_embedding.1} parent=1 // pred_fallthru
      _
    %438 = vsyncpa [#allocation3], 1

</llo_original>
